<compile_context>
chip_gen: v5e
topology: v5e:2x2
jax: 0.10.0
libtpu: 0.0.40
codegen_flags: <defaults>
</compile_context>

<pallas_src>
import math

import jax
import jax.numpy as jnp
from jax import lax
from jax.experimental import pallas as pl
from jax.experimental.pallas import tpu as pltpu

D_K = 64  # the reference PyTorch module always scales by 1/sqrt(64)


def multi_model_kernel(gcn_ref, src_ref, ast_ref, w1_ref, b1_ref, w2_ref, b2_ref,
                       out_ref):
    # Per-batch blocks: gcn/ast (A, D), src (S, D); weights resident across steps.
    gcn = gcn_ref[...]
    src = src_ref[...]

    # conv1 / conv2 (kernel_size=1) == channel-mixing matmul + bias.
    # w1/b1 are pre-scaled by 1/sqrt(d_k) in the wrapper, so q is the scaled query.
    q = jnp.dot(w1_ref[...], gcn, preferred_element_type=jnp.float32) + b1_ref[...]   # (A, D)
    kv = jnp.dot(w2_ref[...], src, preferred_element_type=jnp.float32) + b2_ref[...]  # (A, D), K = V

    # scores = Q_scaled @ K^T : contract over D (lane axis), no explicit transpose.
    scores = lax.dot_general(q, kv, (((1,), (1,)), ((), ())),
                             preferred_element_type=jnp.float32)                      # (A, A)
    scores = scores - jnp.max(scores, axis=-1, keepdims=True)
    e = jnp.exp(scores)
    attn = e / jnp.sum(e, axis=-1, keepdims=True)                                     # exact softmax

    ctx = jnp.dot(attn, kv, preferred_element_type=jnp.float32)                       # (A, D)
    # Direct per-batch store into the (B, A, D) output block (residual fused).
    out_ref[...] = ctx + ast_ref[...]


def multi_model(gcn_embed, src_embed, ast_embed, w1, b1, w2, b2):
    B, A, D = gcn_embed.shape
    S = src_embed.shape[1]
    scale = jnp.float32(1.0 / math.sqrt(D_K))

    # Fold the attention scale into conv1's parameters; biases as (A, 1) columns.
    w1s = (w1 * scale).astype(jnp.float32)
    b1s = (b1 * scale).reshape(A, 1).astype(jnp.float32)
    w2c = w2.astype(jnp.float32)
    b2c = b2.reshape(A, 1).astype(jnp.float32)

    # Scheduling hint for XLA around the custom call.
    flops = 2 * B * A * D * (3 * A + S)            # conv1, conv2, QK^T, attn@V
    transcendentals = B * A * A                    # softmax exp
    bytes_accessed = 4 * (3 * B * A * D + B * S * D + A * A + A * S + 2 * A)
    cost = pl.CostEstimate(flops=flops, transcendentals=transcendentals,
                           bytes_accessed=bytes_accessed)

    vmem = pltpu.MemorySpace.VMEM
    per_batch = lambda b: (b, 0, 0)   # batch-sliced operands
    resident = lambda b: (0, 0)       # weights/biases: same block every step

    out = pl.pallas_call(
        multi_model_kernel,
        out_shape=jax.ShapeDtypeStruct((B, A, D), jnp.float32),
        grid=(B,),
        in_specs=[
            pl.BlockSpec((None, A, D), per_batch, memory_space=vmem),  # gcn_embed
            pl.BlockSpec((None, S, D), per_batch, memory_space=vmem),  # src_embed
            pl.BlockSpec((None, A, D), per_batch, memory_space=vmem),  # ast_embed
            pl.BlockSpec((A, A), resident, memory_space=vmem),         # w1 (pre-scaled)
            pl.BlockSpec((A, 1), resident, memory_space=vmem),         # b1 (pre-scaled)
            pl.BlockSpec((A, S), resident, memory_space=vmem),         # w2
            pl.BlockSpec((A, 1), resident, memory_space=vmem),         # b2
        ],
        out_specs=pl.BlockSpec((None, A, D), per_batch, memory_space=vmem),
        compiler_params=pltpu.CompilerParams(
            dimension_semantics=("parallel",)),  # batch axis -> both TCs on v7x
        cost_estimate=cost,
    )(gcn_embed, src_embed, ast_embed, w1s, b1s, w2c, b2c)

    return out  # already (B, A, D): no wrapper-side transpose needed


def reference(gcn_embed, src_embed, ast_embed, w1, b1, w2, b2):
    gcn1 = jnp.einsum("oc,bcl->bol", w1, gcn_embed) + b1[None, :, None]
    src1 = jnp.einsum("oc,bcl->bol", w2, src_embed) + b2[None, :, None]
    scores = jnp.einsum("bqd,bkd->bqk", gcn1, src1) / math.sqrt(D_K)
    attn = jax.nn.softmax(scores, axis=-1)
    ctx = jnp.einsum("bqk,bkd->bqd", attn, src1)
    return ctx + ast_embed


if __name__ == "__main__":
    B = 2    # batch
    A = 16   # max_ast_node (conv1 channels)
    S = 8    # src_max_length (conv2 input channels)
    D = 32   # embedding length (Conv1d "length" axis)

    key = jax.random.PRNGKey(0)
    k_gcn, k_src, k_ast, k_w1, k_b1, k_w2, k_b2 = jax.random.split(key, 7)

    gcn_embed = jax.random.normal(k_gcn, (B, A, D), dtype=jnp.float32)
    src_embed = jax.random.normal(k_src, (B, S, D), dtype=jnp.float32)
    ast_embed = jax.random.normal(k_ast, (B, A, D), dtype=jnp.float32)

    # Conv1d(kernel_size=1) parameters -> 2D weight + bias.
    bound1 = 1.0 / math.sqrt(A)
    bound2 = 1.0 / math.sqrt(S)
    w1 = jax.random.uniform(k_w1, (A, A), jnp.float32, -bound1, bound1)
    b1 = jax.random.uniform(k_b1, (A,), jnp.float32, -bound1, bound1)
    w2 = jax.random.uniform(k_w2, (A, S), jnp.float32, -bound2, bound2)
    b2 = jax.random.uniform(k_b2, (A,), jnp.float32, -bound2, bound2)

    out = multi_model(gcn_embed, src_embed, ast_embed, w1, b1, w2, b2)
    out = jax.block_until_ready(out)

    ref = reference(gcn_embed, src_embed, ast_embed, w1, b1, w2, b2)
    assert out.shape == (B, A, D)
    assert jnp.allclose(out, ref, rtol=1e-3, atol=1e-3), "mismatch vs pure-JAX reference"

    print("KERNEL_OK")
</pallas_src>

<mosaic_0001>
module attributes {stable_mosaic.version = 11 : i64} {
  func.func @multi_model_kernel(%arg0: i32, %arg1: memref<1x16x32xf32, #tpu.memory_space<vmem>>, %arg2: memref<1x8x32xf32, #tpu.memory_space<vmem>>, %arg3: memref<1x16x32xf32, #tpu.memory_space<vmem>>, %arg4: memref<16x16xf32, #tpu.memory_space<vmem>>, %arg5: memref<16x1xf32, #tpu.memory_space<vmem>>, %arg6: memref<16x8xf32, #tpu.memory_space<vmem>>, %arg7: memref<16x1xf32, #tpu.memory_space<vmem>>, %arg8: memref<1x16x32xf32, #tpu.memory_space<vmem>>) attributes {dimension_semantics = [#tpu.dimension_semantics<parallel>], iteration_bounds = array<i64: 2>, scalar_prefetch = 0 : i64, scratch_operands = 0 : i64, tpu.core_type = #tpu.core_type<tc>, window_params = [{transform_indices = @transform_0, window_bounds = array<i64: 1, 16, 32>}, {transform_indices = @transform_1, window_bounds = array<i64: 1, 8, 32>}, {transform_indices = @transform_2, window_bounds = array<i64: 1, 16, 32>}, {pipeline_mode = #tpu.pipeline_mode<synchronous>, transform_indices = @transform_3, window_bounds = array<i64: 16, 16>}, {pipeline_mode = #tpu.pipeline_mode<synchronous>, transform_indices = @transform_4, window_bounds = array<i64: 16, 1>}, {pipeline_mode = #tpu.pipeline_mode<synchronous>, transform_indices = @transform_5, window_bounds = array<i64: 16, 8>}, {pipeline_mode = #tpu.pipeline_mode<synchronous>, transform_indices = @transform_6, window_bounds = array<i64: 16, 1>}, {transform_indices = @transform_7, window_bounds = array<i64: 1, 16, 32>}]} {
    %c0 = arith.constant 0 : index
    %c0_0 = arith.constant 0 : index
    %c0_1 = arith.constant 0 : index
    %0 = vector.load %arg1[%c0, %c0_0, %c0_1] : memref<1x16x32xf32, #tpu.memory_space<vmem>>, vector<1x16x32xf32>
    %1 = vector.shape_cast %0 : vector<1x16x32xf32> to vector<16x32xf32>
    %c0_2 = arith.constant 0 : index
    %c0_3 = arith.constant 0 : index
    %c0_4 = arith.constant 0 : index
    %2 = vector.load %arg2[%c0_2, %c0_3, %c0_4] : memref<1x8x32xf32, #tpu.memory_space<vmem>>, vector<1x8x32xf32>
    %3 = vector.shape_cast %2 : vector<1x8x32xf32> to vector<8x32xf32>
    %c0_5 = arith.constant 0 : index
    %c0_6 = arith.constant 0 : index
    %4 = vector.load %arg4[%c0_5, %c0_6] : memref<16x16xf32, #tpu.memory_space<vmem>>, vector<16x16xf32>
    %cst = arith.constant dense<0.000000e+00> : vector<16x32xf32>
    %5 = tpu.matmul %4, %1, %cst {dimension_numbers = #tpu.dot_dimension_numbers<[1], [0], [0], [1], [0, 0, 1, 1], [], []>} : vector<16x16xf32>, vector<16x32xf32>, vector<16x32xf32> -> vector<16x32xf32>
    %c0_7 = arith.constant 0 : index
    %c0_8 = arith.constant 0 : index
    %6 = vector.load %arg5[%c0_7, %c0_8] : memref<16x1xf32, #tpu.memory_space<vmem>>, vector<16x1xf32>
    %7 = vector.broadcast %6 : vector<16x1xf32> to vector<16x32xf32>
    %8 = arith.addf %5, %7 : vector<16x32xf32>
    %c0_9 = arith.constant 0 : index
    %c0_10 = arith.constant 0 : index
    %9 = vector.load %arg6[%c0_9, %c0_10] : memref<16x8xf32, #tpu.memory_space<vmem>>, vector<16x8xf32>
    %cst_11 = arith.constant dense<0.000000e+00> : vector<16x32xf32>
    %10 = tpu.matmul %9, %3, %cst_11 {dimension_numbers = #tpu.dot_dimension_numbers<[1], [0], [0], [1], [0, 0, 1, 1], [], []>} : vector<16x8xf32>, vector<8x32xf32>, vector<16x32xf32> -> vector<16x32xf32>
    %c0_12 = arith.constant 0 : index
    %c0_13 = arith.constant 0 : index
    %11 = vector.load %arg7[%c0_12, %c0_13] : memref<16x1xf32, #tpu.memory_space<vmem>>, vector<16x1xf32>
    %12 = vector.broadcast %11 : vector<16x1xf32> to vector<16x32xf32>
    %13 = arith.addf %10, %12 : vector<16x32xf32>
    %cst_14 = arith.constant dense<0.000000e+00> : vector<16x16xf32>
    %14 = tpu.matmul %8, %13, %cst_14 {dimension_numbers = #tpu.dot_dimension_numbers<[1], [1], [0], [0], [0, 0, 1, 0], [], []>} : vector<16x32xf32>, vector<16x32xf32>, vector<16x16xf32> -> vector<16x16xf32>
    %cst_15 = arith.constant dense<0xFF800000> : vector<16xf32>
    %15 = vector.multi_reduction <maximumf>, %14, %cst_15 [1] : vector<16x16xf32> to vector<16xf32>
    %16 = vector.shape_cast %15 : vector<16xf32> to vector<16x1xf32>
    %17 = vector.broadcast %16 : vector<16x1xf32> to vector<16x16xf32>
    %18 = arith.subf %14, %17 : vector<16x16xf32>
    %19 = math.exp %18 : vector<16x16xf32>
    %cst_16 = arith.constant dense<0.000000e+00> : vector<16xf32>
    %20 = vector.multi_reduction <add>, %19, %cst_16 [1] : vector<16x16xf32> to vector<16xf32>
    %21 = vector.shape_cast %20 : vector<16xf32> to vector<16x1xf32>
    %22 = vector.broadcast %21 : vector<16x1xf32> to vector<16x16xf32>
    %23 = arith.divf %19, %22 : vector<16x16xf32>
    %cst_17 = arith.constant dense<0.000000e+00> : vector<16x32xf32>
    %24 = tpu.matmul %23, %13, %cst_17 {dimension_numbers = #tpu.dot_dimension_numbers<[1], [0], [0], [1], [0, 0, 1, 1], [], []>} : vector<16x16xf32>, vector<16x32xf32>, vector<16x32xf32> -> vector<16x32xf32>
    %c0_18 = arith.constant 0 : index
    %c0_19 = arith.constant 0 : index
    %c0_20 = arith.constant 0 : index
    %25 = vector.load %arg3[%c0_18, %c0_19, %c0_20] : memref<1x16x32xf32, #tpu.memory_space<vmem>>, vector<1x16x32xf32>
    %26 = vector.shape_cast %25 : vector<1x16x32xf32> to vector<16x32xf32>
    %27 = arith.addf %24, %26 : vector<16x32xf32>
    %c0_21 = arith.constant 0 : index
    %c0_22 = arith.constant 0 : index
    %c0_23 = arith.constant 0 : index
    %28 = vector.load %arg8[%c0_21, %c0_22, %c0_23] : memref<1x16x32xf32, #tpu.memory_space<vmem>>, vector<1x16x32xf32>
    %29 = vector.shape_cast %28 : vector<1x16x32xf32> to vector<16x32xf32>
    %30 = vector.shape_cast %27 : vector<16x32xf32> to vector<1x16x32xf32>
    tpu.vector_store %arg8[%c0_21, %c0_22, %c0_23], %30 {strides = array<i32>} : memref<1x16x32xf32, #tpu.memory_space<vmem>>, vector<1x16x32xf32>,
    return
  }
  func.func @transform_0(%arg0: i32) -> (i32, i32, i32) {
    %c0_i32 = arith.constant 0 : i32
    %c0_i32_0 = arith.constant 0 : i32
    %c0_i32_1 = arith.constant 0 : i32
    return %arg0, %c0_i32, %c0_i32_0 : i32, i32, i32
  }
  func.func @transform_1(%arg0: i32) -> (i32, i32, i32) {
    %c0_i32 = arith.constant 0 : i32
    %c0_i32_0 = arith.constant 0 : i32
    %c0_i32_1 = arith.constant 0 : i32
    return %arg0, %c0_i32, %c0_i32_0 : i32, i32, i32
  }
  func.func @transform_2(%arg0: i32) -> (i32, i32, i32) {
    %c0_i32 = arith.constant 0 : i32
    %c0_i32_0 = arith.constant 0 : i32
    %c0_i32_1 = arith.constant 0 : i32
    return %arg0, %c0_i32, %c0_i32_0 : i32, i32, i32
  }
  func.func @transform_3(%arg0: i32) -> (i32, i32) {
    %c0_i32 = arith.constant 0 : i32
    %c0_i32_0 = arith.constant 0 : i32
    %c0_i32_1 = arith.constant 0 : i32
    return %c0_i32, %c0_i32_0 : i32, i32
  }
  func.func @transform_4(%arg0: i32) -> (i32, i32) {
    %c0_i32 = arith.constant 0 : i32
    %c0_i32_0 = arith.constant 0 : i32
    %c0_i32_1 = arith.constant 0 : i32
    return %c0_i32, %c0_i32_0 : i32, i32
  }
  func.func @transform_5(%arg0: i32) -> (i32, i32) {
    %c0_i32 = arith.constant 0 : i32
    %c0_i32_0 = arith.constant 0 : i32
    %c0_i32_1 = arith.constant 0 : i32
    return %c0_i32, %c0_i32_0 : i32, i32
  }
  func.func @transform_6(%arg0: i32) -> (i32, i32) {
    %c0_i32 = arith.constant 0 : i32
    %c0_i32_0 = arith.constant 0 : i32
    %c0_i32_1 = arith.constant 0 : i32
    return %c0_i32, %c0_i32_0 : i32, i32
  }
  func.func @transform_7(%arg0: i32) -> (i32, i32, i32) {
    %c0_i32 = arith.constant 0 : i32
    %c0_i32_0 = arith.constant 0 : i32
    %c0_i32_1 = arith.constant 0 : i32
    return %arg0, %c0_i32, %c0_i32_0 : i32, i32, i32
  }
}

</mosaic_0001>

<llo_original>
// kernel: tpu_custom_call.1
$region0: #{tpu_custom_call.1}
  #allocation0 [shape = 'u32[]', space=smem, size = 0x4, offset = 0x4, fixed_abs, tag = 'smem constant byte address 0x4 - core index']
  #allocation1 [shape = 'u32[72,128]{1,0:T(1,128)}', space=vmem, size = 0x9000, scoped, tag = 'internal scratch']
  %s0 = inlined_call_operand.vmem [shape: f32[2,16,32], index: 0, kind: input, shape index: {}]
  %s1 = inlined_call_operand.vmem [shape: f32[2,8,32], index: 1, kind: input, shape index: {}]
  %s2 = inlined_call_operand.hbm [shape: f32[2,16,32], index: 2, kind: input, shape index: {}]
  %s3 = inlined_call_operand.hbm [shape: f32[16,16], index: 3, kind: input, shape index: {}]
  %s4 = inlined_call_operand.vmem [shape: f32[16,1], index: 4, kind: input, shape index: {}]
  %s5 = inlined_call_operand.vmem [shape: f32[16,8], index: 5, kind: input, shape index: {}]
  %s6 = inlined_call_operand.vmem [shape: f32[16,1], index: 6, kind: input, shape index: {}]
  %s7 = inlined_call_operand.hbm [shape: f32[2,16,32], index: 7, kind: output, shape index: {}]
  %s8 = sld [smem:[#allocation0]]
  $region69: #{tpu_custom_call.1} parent=0
    _
  %s10 = ssub.s32 1, %s8
  %s11 = scalar_select 0, %s10, %s8
  $region1: #{tpu_custom_call.1} parent=0
    #allocation2 [shape = 'u8[16384]{0}', space=vmem, size = 0x4000, scoped, tag = 'input window, operand 2']
    #allocation3 [shape = 's32[2]{0}', space=sflag, size = 0x8, scoped, tag = 'scoped memory for tpu_custom_call.1']
    #allocation4 [shape = 's32[2]{0}', space=sflag, size = 0x8, scoped, tag = 'scoped memory for tpu_custom_call.1']
    #allocation5 [shape = 'u8[8192]{0}', space=vmem, size = 0x2000, scoped, tag = 'input window, operand 3, single buffered']
    #allocation6 [shape = 's32[1]{0}', space=sflag, size = 0x4, scoped, tag = 'scoped memory for tpu_custom_call.1']
    #allocation7 [shape = 'u8[16384]{0}', space=vmem, size = 0x4000, scoped, tag = 'output window, operand 0']
    %12 = vsyncpa [#allocation3], 0
    %s13 = scalar_lea.sflag [#allocation3], 1
    %14 = vsyncpa %s13, 0
    %15 = vsyncpa [#allocation6], 0
    %16 = vsyncpa [#allocation4], 0
    %s17 = scalar_lea.sflag [#allocation4], 1
    %18 = vsyncpa %s17, 0
    loop: start=0, step=1, limit=4
    $region2: #{tpu_custom_call.1} parent=1 // loop_pre_header
      _
    $region3: #{tpu_custom_call.1} parent=1 // loop_header
      %s20 = sphi 0, %s24
      %p21 = scmp.ge.s32.totalorder %s20, 4
      %s30 = sphi 0, %s32
      %s33 = sphi 0, %s30
      %s34 = sphi 0, %s33
      %s50 = sphi 0, %s34
      %s56 = sphi 0, %s58
      %s59 = sphi 0, %s56
      %s60 = sphi 0, %s59
      %s76 = sphi 0, %s60
      %s82 = sphi 0, %s84
      %s85 = sphi 0, %s82
      %s86 = sphi 0, %s85
      %s102 = sphi 0, %s86
      %s106 = sphi 0, %s106
      %s108 = sphi 0, %s106
      %s109 = sphi 0, %s108
      %s123 = sphi 0, %s109
      %s127 = sphi 0, %s127
      %s129 = sphi 0, %s127
      %s130 = sphi 0, %s129
      %s144 = sphi 0, %s130
      %s148 = sphi 0, %s148
      %s150 = sphi 0, %s148
      %s151 = sphi 0, %s150
      %s165 = sphi 0, %s151
      %s169 = sphi 0, %s169
      %s171 = sphi 0, %s169
      %s172 = sphi 0, %s171
      %s186 = sphi 0, %s172
      %s192 = sphi 0, %s194
      %s195 = sphi 0, %s192
      %s196 = sphi 0, %s195
      %s212 = sphi 0, %s196
    $region4: #{tpu_custom_call.1} parent=1 // loop_header_branch
      %23 = sbr.rel (%p21) target = $region8
    $region5: #{tpu_custom_call.1} parent=1 // loop_body
      %s25 = ssub.s32 %s20, 1
      %s26 = ssub.s32 %s20, 2
      %s27 = sadd.s32 %s20, 1
      %s28 = ssub.s32 %s20, %s27
      %p29 = scmp.eq.s32.totalorder %s28, 0
      %s31 = sadd.s32 %s30, 1
      %s32 = scalar_select %p29, %s30, %s31
      %p35 = pneg %p29
      %p36 = scmp.eq.s32.totalorder %s20, 1
      %p37 = por %p35, %p36
      %p38 = scmp.ne.s32.totalorder %s30, %s33
      %p39 = scmp.eq.s32.totalorder %s20, 0
      %p40 = por %p38, %p39
      %p41 = scmp.ne.s32.totalorder %s30, %s33
      %p42 = scmp.eq.s32.totalorder %s25, 1
      %p43 = por %p41, %p42
      %p44 = scmp.ne.s32.totalorder %s33, %s34
      %p45 = scmp.eq.s32.totalorder %s25, 0
      %p46 = por %p44, %p45
      %p47 = scmp.ne.s32.totalorder %s33, %s34
      %p48 = scmp.eq.s32.totalorder %s26, 1
      %p49 = por %p47, %p48
      %p51 = scmp.ne.s32.totalorder %s34, %s50
      %p52 = scmp.eq.s32.totalorder %s26, 0
      %p53 = por %p51, %p52
      %s54 = ssub.s32 %s20, %s27
      %p55 = scmp.eq.s32.totalorder %s54, 0
      %s57 = sadd.s32 %s56, 1
      %s58 = scalar_select %p55, %s56, %s57
      %p61 = pneg %p55
      %p62 = scmp.eq.s32.totalorder %s20, 1
      %p63 = por %p61, %p62
      %p64 = scmp.ne.s32.totalorder %s56, %s59
      %p65 = scmp.eq.s32.totalorder %s20, 0
      %p66 = por %p64, %p65
      %p67 = scmp.ne.s32.totalorder %s56, %s59
      %p68 = scmp.eq.s32.totalorder %s25, 1
      %p69 = por %p67, %p68
      %p70 = scmp.ne.s32.totalorder %s59, %s60
      %p71 = scmp.eq.s32.totalorder %s25, 0
      %p72 = por %p70, %p71
      %p73 = scmp.ne.s32.totalorder %s59, %s60
      %p74 = scmp.eq.s32.totalorder %s26, 1
      %p75 = por %p73, %p74
      %p77 = scmp.ne.s32.totalorder %s60, %s76
      %p78 = scmp.eq.s32.totalorder %s26, 0
      %p79 = por %p77, %p78
      %s80 = ssub.s32 %s20, %s27
      %p81 = scmp.eq.s32.totalorder %s80, 0
      %s83 = sadd.s32 %s82, 1
      %s84 = scalar_select %p81, %s82, %s83
      %p87 = pneg %p81
      %p88 = scmp.eq.s32.totalorder %s20, 1
      %p89 = por %p87, %p88
      %p90 = scmp.ne.s32.totalorder %s82, %s85
      %p91 = scmp.eq.s32.totalorder %s20, 0
      %p92 = por %p90, %p91
      %p93 = scmp.ne.s32.totalorder %s82, %s85
      %p94 = scmp.eq.s32.totalorder %s25, 1
      %p95 = por %p93, %p94
      %p96 = scmp.ne.s32.totalorder %s85, %s86
      %p97 = scmp.eq.s32.totalorder %s25, 0
      %p98 = por %p96, %p97
      %p99 = scmp.ne.s32.totalorder %s85, %s86
      %p100 = scmp.eq.s32.totalorder %s26, 1
      %p101 = por %p99, %p100
      %p103 = scmp.ne.s32.totalorder %s86, %s102
      %p104 = scmp.eq.s32.totalorder %s26, 0
      %p105 = por %p103, %p104
      %s107 = sadd.s32 %s106, 1
      %p110 = scmp.eq.s32.totalorder %s20, 1
      %p111 = scmp.ne.s32.totalorder %s106, %s108
      %p112 = scmp.eq.s32.totalorder %s20, 0
      %p113 = por %p111, %p112
      %p114 = scmp.ne.s32.totalorder %s106, %s108
      %p115 = scmp.eq.s32.totalorder %s25, 1
      %p116 = por %p114, %p115
      %p117 = scmp.ne.s32.totalorder %s108, %s109
      %p118 = scmp.eq.s32.totalorder %s25, 0
      %p119 = por %p117, %p118
      %p120 = scmp.ne.s32.totalorder %s108, %s109
      %p121 = scmp.eq.s32.totalorder %s26, 1
      %p122 = por %p120, %p121
      %p124 = scmp.ne.s32.totalorder %s109, %s123
      %p125 = scmp.eq.s32.totalorder %s26, 0
      %p126 = por %p124, %p125
      %s128 = sadd.s32 %s127, 1
      %p131 = scmp.eq.s32.totalorder %s20, 1
      %p132 = scmp.ne.s32.totalorder %s127, %s129
      %p133 = scmp.eq.s32.totalorder %s20, 0
      %p134 = por %p132, %p133
      %p135 = scmp.ne.s32.totalorder %s127, %s129
      %p136 = scmp.eq.s32.totalorder %s25, 1
      %p137 = por %p135, %p136
      %p138 = scmp.ne.s32.totalorder %s129, %s130
      %p139 = scmp.eq.s32.totalorder %s25, 0
      %p140 = por %p138, %p139
      %p141 = scmp.ne.s32.totalorder %s129, %s130
      %p142 = scmp.eq.s32.totalorder %s26, 1
      %p143 = por %p141, %p142
      %p145 = scmp.ne.s32.totalorder %s130, %s144
      %p146 = scmp.eq.s32.totalorder %s26, 0
      %p147 = por %p145, %p146
      %s149 = sadd.s32 %s148, 1
      %p152 = scmp.eq.s32.totalorder %s20, 1
      %p153 = scmp.ne.s32.totalorder %s148, %s150
      %p154 = scmp.eq.s32.totalorder %s20, 0
      %p155 = por %p153, %p154
      %p156 = scmp.ne.s32.totalorder %s148, %s150
      %p157 = scmp.eq.s32.totalorder %s25, 1
      %p158 = por %p156, %p157
      %p159 = scmp.ne.s32.totalorder %s150, %s151
      %p160 = scmp.eq.s32.totalorder %s25, 0
      %p161 = por %p159, %p160
      %p162 = scmp.ne.s32.totalorder %s150, %s151
      %p163 = scmp.eq.s32.totalorder %s26, 1
      %p164 = por %p162, %p163
      %p166 = scmp.ne.s32.totalorder %s151, %s165
      %p167 = scmp.eq.s32.totalorder %s26, 0
      %p168 = por %p166, %p167
      %s170 = sadd.s32 %s169, 1
      %p173 = scmp.eq.s32.totalorder %s20, 1
      %p174 = scmp.ne.s32.totalorder %s169, %s171
      %p175 = scmp.eq.s32.totalorder %s20, 0
      %p176 = por %p174, %p175
      %p177 = scmp.ne.s32.totalorder %s169, %s171
      %p178 = scmp.eq.s32.totalorder %s25, 1
      %p179 = por %p177, %p178
      %p180 = scmp.ne.s32.totalorder %s171, %s172
      %p181 = scmp.eq.s32.totalorder %s25, 0
      %p182 = por %p180, %p181
      %p183 = scmp.ne.s32.totalorder %s171, %s172
      %p184 = scmp.eq.s32.totalorder %s26, 1
      %p185 = por %p183, %p184
      %p187 = scmp.ne.s32.totalorder %s172, %s186
      %p188 = scmp.eq.s32.totalorder %s26, 0
      %p189 = por %p187, %p188
      %s190 = ssub.s32 %s20, %s27
      %p191 = scmp.eq.s32.totalorder %s190, 0
      %s193 = sadd.s32 %s192, 1
      %s194 = scalar_select %p191, %s192, %s193
      %p197 = pneg %p191
      %p198 = scmp.eq.s32.totalorder %s20, 1
      %p199 = por %p197, %p198
      %p200 = scmp.ne.s32.totalorder %s192, %s195
      %p201 = scmp.eq.s32.totalorder %s20, 0
      %p202 = por %p200, %p201
      %p203 = scmp.ne.s32.totalorder %s192, %s195
      %p204 = scmp.eq.s32.totalorder %s25, 1
      %p205 = por %p203, %p204
      %p206 = scmp.ne.s32.totalorder %s195, %s196
      %p207 = scmp.eq.s32.totalorder %s25, 0
      %p208 = por %p206, %p207
      %p209 = scmp.ne.s32.totalorder %s195, %s196
      %p210 = scmp.eq.s32.totalorder %s26, 1
      %p211 = por %p209, %p210
      %p213 = scmp.ne.s32.totalorder %s196, %s212
      %p214 = scmp.eq.s32.totalorder %s26, 0
      %p215 = por %p213, %p214
      %p216 = scmp.le.s32.totalorder 1, %s20
      %p217 = scmp.lt.s32.totalorder %s20, 3
      %p218 = pnand %p216, %p217
      %p219 = pneg %p218
      // Predicated region
      $region9: #{tpu_custom_call.1} parent=5 // pred_check
        _
      $region10: #{tpu_custom_call.1} parent=5 // pred_check_branch
        %221 = sbr.rel (%p218) target = $region12
      $region11: #{tpu_custom_call.1} parent=5 // pred_region
        %s222 = ssub.s32 %s20, 1
        // Predicated region
        $region13: #{tpu_custom_call.1} parent=11 // pred_check
          %p223 = pneg %p119
        $region14: #{tpu_custom_call.1} parent=11 // pred_check_branch
          %225 = sbr.rel (%p223) target = $region16
        $region15: #{tpu_custom_call.1} parent=11 // pred_region
          %227 = vsyncadd [#allocation6], 0
          %s228 = sshll.u32 %s3, 4
          %s229 = int_to_ptr.hbm [resolvable:$true] %s228
          %s230 = sshll.u32 [#allocation5], 4
          %s231 = int_to_ptr.vmem [resolvable:$true] %s230
          %236 = dma.hbm_to_vmem [thread:$0]  %s229, 256, %s231, [#allocation6], 128, 128, 8
        $region16: #{tpu_custom_call.1} parent=11 // pred_fallthru
          _
        // Predicated region
        $region17: #{tpu_custom_call.1} parent=11 // pred_check
          %p237 = pneg %p140
        $region18: #{tpu_custom_call.1} parent=11 // pred_check_branch
          %239 = sbr.rel (%p237) target = $region20
        $region19: #{tpu_custom_call.1} parent=11 // pred_region
          _
        $region20: #{tpu_custom_call.1} parent=11 // pred_fallthru
          _
        // Predicated region
        $region21: #{tpu_custom_call.1} parent=11 // pred_check
          %p240 = pneg %p161
        $region22: #{tpu_custom_call.1} parent=11 // pred_check_branch
          %242 = sbr.rel (%p240) target = $region24
        $region23: #{tpu_custom_call.1} parent=11 // pred_region
          _
        $region24: #{tpu_custom_call.1} parent=11 // pred_fallthru
          _
        // Predicated region
        $region25: #{tpu_custom_call.1} parent=11 // pred_check
          %p243 = pneg %p182
        $region26: #{tpu_custom_call.1} parent=11 // pred_check_branch
          %245 = sbr.rel (%p243) target = $region28
        $region27: #{tpu_custom_call.1} parent=11 // pred_region
          _
        $region28: #{tpu_custom_call.1} parent=11 // pred_fallthru
          _
      $region12: #{tpu_custom_call.1} parent=5 // pred_fallthru
        _
      %p246 = scmp.lt.s32.totalorder %s20, 2
      // Predicated region
      $region29: #{tpu_custom_call.1} parent=5 // pred_check
        %p247 = pneg %p246
      $region30: #{tpu_custom_call.1} parent=5 // pred_check_branch
        %249 = sbr.rel (%p247) target = $region32
      $region31: #{tpu_custom_call.1} parent=5 // pred_region
        // Predicated region
        $region33: #{tpu_custom_call.1} parent=31 // pred_check
          %p250 = pneg %p40
        $region34: #{tpu_custom_call.1} parent=31 // pred_check_branch
          %252 = sbr.rel (%p250) target = $region36
        $region35: #{tpu_custom_call.1} parent=31 // pred_region
          %p253 = scmp.lt.s32.totalorder %s20, 1
          %s254 = scalar_select %p253, %s20, 1
          %s255 = smul.addr %s254, 2
          %s256 = smul.addr %s255, 8
          %s257 = scalar_lea.vmem %s0, %s256
        $region36: #{tpu_custom_call.1} parent=31 // pred_fallthru
          _
        // Predicated region
        $region37: #{tpu_custom_call.1} parent=31 // pred_check
          %p258 = pneg %p66
        $region38: #{tpu_custom_call.1} parent=31 // pred_check_branch
          %260 = sbr.rel (%p258) target = $region40
        $region39: #{tpu_custom_call.1} parent=31 // pred_region
          %p261 = scmp.lt.s32.totalorder %s20, 1
          %s262 = scalar_select %p261, %s20, 1
          %s263 = smul.addr %s262, 8
          %s264 = scalar_lea.vmem %s1, %s263
        $region40: #{tpu_custom_call.1} parent=31 // pred_fallthru
          _
        // Predicated region
        $region41: #{tpu_custom_call.1} parent=31 // pred_check
          %p265 = pneg %p92
        $region42: #{tpu_custom_call.1} parent=31 // pred_check_branch
          %267 = sbr.rel (%p265) target = $region44
        $region43: #{tpu_custom_call.1} parent=31 // pred_region
          %s268 = sand.u32 %s82, 1
          %s269 = scalar_lea.sflag [#allocation3], %s268
          %s270 = sand.u32 %s82, 1
          %s271 = smul.addr %s270, 16
          %s272 = scalar_lea.vmem [#allocation2], %s271
          %274 = vsyncadd %s269, 0
          %s275 = smul.addr %s20, 2
          %s276 = smul.addr %s275, 8
          %s277 = scalar_lea.hbm %s2, %s276
          %s278 = sshll.u32 %s277, 4
          %s279 = int_to_ptr.hbm [resolvable:$true] %s278
          %s280 = sshll.u32 %s272, 4
          %s281 = int_to_ptr.vmem [resolvable:$true] %s280
          %286 = dma.hbm_to_vmem [thread:$0]  %s279, 256, %s281, %s269, 128, 128, 8
        $region44: #{tpu_custom_call.1} parent=31 // pred_fallthru
          _
      $region32: #{tpu_custom_call.1} parent=5 // pred_fallthru
        _
      %p287 = scmp.le.s32.totalorder 1, %s20
      %p288 = scmp.lt.s32.totalorder %s20, 3
      %p289 = pnand %p287, %p288
      %p290 = pneg %p289
      // Predicated region
      $region45: #{tpu_custom_call.1} parent=5 // pred_check
        _
      $region46: #{tpu_custom_call.1} parent=5 // pred_check_branch
        %292 = sbr.rel (%p289) target = $region48
      $region47: #{tpu_custom_call.1} parent=5 // pred_region
        %s293 = ssub.s32 %s20, 1
        %s294 = sand.u32 %s85, 1
        %s295 = scalar_lea.sflag [#allocation3], %s294
        %s296 = sand.u32 %s85, 1
        %s297 = smul.addr %s296, 16
        %s298 = scalar_lea.vmem [#allocation2], %s297
        // Predicated region
        $region49: #{tpu_custom_call.1} parent=47 // pred_check
          %p299 = pneg %p98
        $region50: #{tpu_custom_call.1} parent=47 // pred_check_branch
          %301 = sbr.rel (%p299) target = $region52
        $region51: #{tpu_custom_call.1} parent=47 // pred_region
          %303 = dma.done %s295, 256
        $region52: #{tpu_custom_call.1} parent=47 // pred_fallthru
          _
        // Predicated region
        $region53: #{tpu_custom_call.1} parent=47 // pred_check
          %p304 = pneg %p119
        $region54: #{tpu_custom_call.1} parent=47 // pred_check_branch
          %306 = sbr.rel (%p304) target = $region56
        $region55: #{tpu_custom_call.1} parent=47 // pred_region
          %308 = dma.done [#allocation6], 256
        $region56: #{tpu_custom_call.1} parent=47 // pred_fallthru
          _
        %p309 = scmp.lt.s32.totalorder %s25, 1
        %s310 = scalar_select %p309, %s25, 1
        %s311 = smul.addr %s310, 2
        %s312 = smul.addr %s311, 8
        %s313 = scalar_lea.vmem %s0, %s312
        %p314 = pneg %p46
        %p315 = pneg %p43
        %p316 = scmp.lt.s32.totalorder %s25, 1
        %s317 = scalar_select %p316, %s25, 1
        %s318 = smul.addr %s317, 8
        %s319 = scalar_lea.vmem %s1, %s318
        %p320 = pneg %p72
        %p321 = pneg %p69
        %s322 = sand.u32 %s85, 1
        %s323 = scalar_lea.sflag [#allocation3], %s322
        %s324 = sand.u32 %s85, 1
        %s325 = smul.addr %s324, 16
        %s326 = scalar_lea.vmem [#allocation2], %s325
        %p327 = pneg %p98
        %p328 = pneg %p95
        %p329 = pneg %p119
        %p330 = pneg %p116
        %p331 = pneg %p140
        %p332 = pneg %p137
        %p333 = pneg %p161
        %p334 = pneg %p158
        %p335 = pneg %p182
        %p336 = pneg %p179
        %p337 = pneg %p208
        %p338 = pneg %p205
        %s339 = sand.u32 %s195, 1
        %s340 = scalar_lea.sflag [#allocation4], %s339
        %s341 = sand.u32 %s195, 1
        %s342 = smul.addr %s341, 16
        %s343 = scalar_lea.vmem [#allocation7], %s342
        %p344 = scmp.lt.s32.totalorder %s25, 1
        %s345 = scalar_select %p344, %s25, 1
        %s346 = smul.addr %s345, 2
        %s347 = smul.addr %s346, 8
        %s348 = scalar_lea.vmem %s0, %s347
        %p349 = scmp.lt.s32.totalorder %s25, 1
        %s350 = scalar_select %p349, %s25, 1
        %s351 = smul.addr %s350, 8
        %s352 = scalar_lea.vmem %s1, %s351
        %v353 = vld [vmem:[%s348] sm:$0xff]
        %v354 = vld [vmem:[%s348 + $0x8] sm:$0xff]
        %v355 = vld [vmem:[%s352] sm:$0xff]
        %v356 = vld [vmem:[#allocation5] sm:$0xff]
        %v357 = vld [vmem:[#allocation5 + $0x8] sm:$0xff]
        %v358 = vld [vmem:[%s4] sm:$0xff]
        %v359 = vld [vmem:[%s4 + $0x8] sm:$0xff]
        %361 = vset.pattern.permute.xlu0 0
        %362 = vperm.xlu0 %361, %v358
        %v363 = vpop.permute.xlu0 %362
        %366 = vset.pattern.permute.xlu0 0
        %367 = vperm.xlu0 %366, %v359
        %v368 = vpop.permute.xlu0 %367
        %vm370 = vcmask 130048
        %v372 = vsel %vm370, %v356, 0
        %v375 = vsel %vm370, %v357, 0
        %377 = vmatpush.msra.mxu0 0.0
        %378 = vmatpush.msra.mxu0 0.0
        %379 = vmatpush.msra.mxu0 0.0
        %380 = vmatpush.msra.mxu0 0.0
        %381 = vmatpush.msra.mxu0 0.0
        %382 = vmatpush.msra.mxu0 0.0
        %383 = vmatpush.msra.mxu0 0.0
        %384 = vmatpush.msra.mxu0 0.0
        %385 = vmatpush.msra.mxu0 0.0
        %386 = vmatpush.msra.mxu0 0.0
        %387 = vmatpush.msra.mxu0 0.0
        %388 = vmatpush.msra.mxu0 0.0
        %389 = vmatpush.msra.mxu0 0.0
        %390 = vmatpush.msra.mxu0 0.0
        %391 = vmatpush.msra.mxu0 %v354
        %392 = vmatpush.msra.mxu0 %v353
        %393 = vmatmul.f32.gmra.mxu0 %v372
        %v394 = vpop.f32.mrf.mxu0
        %v395 = vadd.f32 %v363, %v394
        %396 = vmatmul.f32.gmra.mxu0 %v375
        %v397 = vpop.f32.mrf.mxu0
        %v398 = vadd.f32 %v368, %v397
        %399 = vdwg.mxu0
        %v400 = vld [vmem:[%s5] sm:$0xff]
        %v401 = vld [vmem:[%s5 + $0x8] sm:$0xff]
        %v402 = vld [vmem:[%s6] sm:$0xff]
        %v403 = vld [vmem:[%s6 + $0x8] sm:$0xff]
        %405 = vset.pattern.permute.xlu0 0
        %406 = vperm.xlu0 %405, %v402
        %v407 = vpop.permute.xlu0 %406
        %410 = vset.pattern.permute.xlu0 0
        %411 = vperm.xlu0 %410, %v403
        %v412 = vpop.permute.xlu0 %411
        %vm414 = vcmask 64512
        %v416 = vsel %vm414, %v400, 0
        %v419 = vsel %vm414, %v401, 0
        %421 = vmatpush.msra.mxu0 0.0
        %422 = vmatpush.msra.mxu0 0.0
        %423 = vmatpush.msra.mxu0 0.0
        %424 = vmatpush.msra.mxu0 0.0
        %425 = vmatpush.msra.mxu0 0.0
        %426 = vmatpush.msra.mxu0 0.0
        %427 = vmatpush.msra.mxu0 0.0
        %428 = vmatpush.msra.mxu0 0.0
        %429 = vmatpush.msra.mxu0 0.0
        %430 = vmatpush.msra.mxu0 0.0
        %431 = vmatpush.msra.mxu0 0.0
        %432 = vmatpush.msra.mxu0 0.0
        %433 = vmatpush.msra.mxu0 0.0
        %434 = vmatpush.msra.mxu0 0.0
        %435 = vmatpush.msra.mxu0 0.0
        %436 = vmatpush.msra.mxu0 %v355
        %437 = vmatmul.f32.gmra.mxu0 %v416
        %v438 = vpop.f32.mrf.mxu0
        %v439 = vadd.f32 %v407, %v438
        %440 = vmatmul.f32.gmra.mxu0 %v419
        %v441 = vpop.f32.mrf.mxu0
        %v442 = vadd.f32 %v412, %v441
        %443 = vdwg.mxu0
        %vm444 = vcmask 261120
        %v446 = vsel %vm444, %v395, 0
        %v449 = vsel %vm444, %v398, 0
        %v452 = vsel %vm444, %v439, 0
        %v455 = vsel %vm444, %v442, 0
        %457 = vmatpush.xpose.msra.mxu0 0.0
        %458 = vmatpush.xpose.msra.mxu0 0.0
        %459 = vmatpush.xpose.msra.mxu0 0.0
        %460 = vmatpush.xpose.msra.mxu0 0.0
        %461 = vmatpush.xpose.msra.mxu0 0.0
        %462 = vmatpush.xpose.msra.mxu0 0.0
        %463 = vmatpush.xpose.msra.mxu0 0.0
        %464 = vmatpush.xpose.msra.mxu0 0.0
        %465 = vmatpush.xpose.msra.mxu0 0.0
        %466 = vmatpush.xpose.msra.mxu0 0.0
        %467 = vmatpush.xpose.msra.mxu0 0.0
        %468 = vmatpush.xpose.msra.mxu0 0.0
        %469 = vmatpush.xpose.msra.mxu0 0.0
        %470 = vmatpush.xpose.msra.mxu0 0.0
        %471 = vmatpush.xpose.msra.mxu0 %v455
        %472 = vmatpush.xpose.msra.mxu0 %v452
        %473 = vmatmul.f32.gmra.mxu0 %v446
        %v474 = vpop.f32.mrf.mxu0
        %v475 = vadd.f32 0.0, %v474
        %476 = vmatmul.f32.gmra.mxu0 %v449
        %v477 = vpop.f32.mrf.mxu0
        %v478 = vadd.f32 0.0, %v477
        %479 = vdwg.mxu0
        %v480 = vsel %vm370, %v475, -inf
        %481 = vmax.xlane.f32.xlu0 %v480
        %v482 = vpop.xlane.xlu0 %481
        %v483 = vsel %vm370, %v478, -inf
        %484 = vmax.xlane.f32.xlu0 %v483
        %v485 = vpop.xlane.xlu0 %484
        %v486 = vsub.f32 %v475, %v482
        %v487 = vsub.f32 %v478, %v485
        %v488 = vmul.f32 %v486, 1.442695
        %v489 = vpow.pop %v488
        %v490 = vmul.f32 %v487, 1.442695
        %v491 = vpow.pop %v490
        %v492 = vsel %vm370, %v489, 0.0
        %493 = vadd.xlane.f32.xlu0 %v492
        %v494 = vpop.xlane.xlu0 %493
        %v495 = vsel %vm370, %v491, 0.0
        %496 = vadd.xlane.f32.xlu0 %v495
        %v497 = vpop.xlane.xlu0 %496
        %v498 = vrcp.pop %v494
        %v499 = vmul.f32 %v494, %v498
        %v500 = vsub.f32 1.0, %v499
        %v501 = vmul.f32 %v498, %v500
        %v502 = vadd.f32 %v498, %v501
        %vm503 = vweird.f32 %v494
        %vm504 = vweird.f32 %v498
        %vm505 = vmor %vm503, %vm504
        %v506 = vsel %vm505, %v498, %v502
        %v507 = vand.u32 2147483647, %v494
        %vm508 = vcmp.eq.f32.partialorder %v507, 8.507059e+37
        %v509 = vand.u32 %v494, 2147483648
        %v510 = vor.u32 1.1754944e-38, %v509
        %v511 = vsel %vm508, %v510, %v506
        %v512 = vmul.f32 %v489, %v511
        %v513 = vrcp.pop %v497
        %v514 = vmul.f32 %v497, %v513
        %v515 = vsub.f32 1.0, %v514
        %v516 = vmul.f32 %v513, %v515
        %v517 = vadd.f32 %v513, %v516
        %vm518 = vweird.f32 %v497
        %vm519 = vweird.f32 %v513
        %vm520 = vmor %vm518, %vm519
        %v521 = vsel %vm520, %v513, %v517
        %v522 = vand.u32 2147483647, %v497
        %vm523 = vcmp.eq.f32.partialorder %v522, 8.507059e+37
        %v524 = vand.u32 %v497, 2147483648
        %v525 = vor.u32 1.1754944e-38, %v524
        %v526 = vsel %vm523, %v525, %v521
        %v527 = vmul.f32 %v491, %v526
        %v528 = vld [vmem:[%s298] sm:$0xff]
        %v529 = vld [vmem:[%s298 + $0x8] sm:$0xff]
        %v531 = vsel %vm370, %v512, 0
        %v534 = vsel %vm370, %v527, 0
        %536 = vmatpush.msra.mxu0 0.0
        %537 = vmatpush.msra.mxu0 0.0
        %538 = vmatpush.msra.mxu0 0.0
        %539 = vmatpush.msra.mxu0 0.0
        %540 = vmatpush.msra.mxu0 0.0
        %541 = vmatpush.msra.mxu0 0.0
        %542 = vmatpush.msra.mxu0 0.0
        %543 = vmatpush.msra.mxu0 0.0
        %544 = vmatpush.msra.mxu0 0.0
        %545 = vmatpush.msra.mxu0 0.0
        %546 = vmatpush.msra.mxu0 0.0
        %547 = vmatpush.msra.mxu0 0.0
        %548 = vmatpush.msra.mxu0 0.0
        %549 = vmatpush.msra.mxu0 0.0
        %550 = vmatpush.msra.mxu0 %v442
        %551 = vmatpush.msra.mxu0 %v439
        %552 = vmatmul.f32.gmra.mxu0 %v531
        %v553 = vpop.f32.mrf.mxu0
        %v554 = vadd.f32 %v528, %v553
        %555 = vmatmul.f32.gmra.mxu0 %v534
        %v556 = vpop.f32.mrf.mxu0
        %v557 = vadd.f32 %v529, %v556
        %558 = vdwg.mxu0
        %559 = vst.msk [vmem:[%s343] sm:$0xff] %vm444, %v554
        %560 = vst.msk [vmem:[%s343 + $0x8] sm:$0xff] %vm444, %v557
        %s561 = sand.u32 %s195, 1
        %s562 = scalar_lea.sflag [#allocation4], %s561
        %s563 = sand.u32 %s195, 1
        %s564 = smul.addr %s563, 16
        %s565 = scalar_lea.vmem [#allocation7], %s564
        // Predicated region
        $region57: #{tpu_custom_call.1} parent=47 // pred_check
          %p566 = pneg %p205
        $region58: #{tpu_custom_call.1} parent=47 // pred_check_branch
          %568 = sbr.rel (%p566) target = $region60
        $region59: #{tpu_custom_call.1} parent=47 // pred_region
          %570 = vsyncadd %s562, 0
          %s571 = smul.addr %s25, 2
          %s572 = smul.addr %s571, 8
          %s573 = scalar_lea.hbm %s7, %s572
          %s574 = sshll.u32 %s565, 4
          %s575 = int_to_ptr.vmem [resolvable:$true] %s574
          %s576 = sshll.u32 %s573, 4
          %s577 = int_to_ptr.hbm [resolvable:$true] %s576
          %582 = dma.vmem_to_hbm [thread:$0]  %s575, 256, %s577, %s562, 128, 128, 8
        $region60: #{tpu_custom_call.1} parent=47 // pred_fallthru
          _
      $region48: #{tpu_custom_call.1} parent=5 // pred_fallthru
        _
      %p583 = scmp.le.s32.totalorder 2, %s20
      // Predicated region
      $region61: #{tpu_custom_call.1} parent=5 // pred_check
        %p584 = pneg %p583
      $region62: #{tpu_custom_call.1} parent=5 // pred_check_branch
        %586 = sbr.rel (%p584) target = $region64
      $region63: #{tpu_custom_call.1} parent=5 // pred_region
        %s587 = ssub.s32 %s20, 2
        // Predicated region
        $region65: #{tpu_custom_call.1} parent=63 // pred_check
          %p588 = pneg %p211
        $region66: #{tpu_custom_call.1} parent=63 // pred_check_branch
          %590 = sbr.rel (%p588) target = $region68
        $region67: #{tpu_custom_call.1} parent=63 // pred_region
          %s591 = sand.u32 %s196, 1
          %s592 = scalar_lea.sflag [#allocation4], %s591
          %s593 = sand.u32 %s196, 1
          %s594 = smul.addr %s593, 16
          %s595 = scalar_lea.vmem [#allocation7], %s594
          %597 = dma.done %s592, 256
        $region68: #{tpu_custom_call.1} parent=63 // pred_fallthru
          _
      $region64: #{tpu_custom_call.1} parent=5 // pred_fallthru
        _
    $region6: #{tpu_custom_call.1} parent=1 // loop_footer
      %s24 = sadd.s32 1, %s20
    $region7: #{tpu_custom_call.1} parent=1 // loop_footer_branch
      %19 = sbr.rel target = $region3
    $region8: #{tpu_custom_call.1} parent=1 // loop_exit
      _
    %598 = vsyncpa [#allocation3], 1
    %s599 = scalar_lea.sflag [#allocation3], 1
    %600 = vsyncpa %s599, 1
    %601 = vsyncpa [#allocation6], 1
    %602 = vsyncpa [#allocation4], 1
    %s603 = scalar_lea.sflag [#allocation4], 1
    %604 = vsyncpa %s603, 1

</llo_original>
